<compile_context>
chip_gen: v7x
topology: tpu7x:2x2x1
jax: 0.10.0
libtpu: 0.0.40
codegen_flags: <defaults>
</compile_context>

<pallas_src>
import math
import functools

import jax
import jax.numpy as jnp
from jax.experimental import pallas as pl
from jax.experimental.pallas import tpu as pltpu


def _round_up(x: int, m: int) -> int:
    return -(-x // m) * m


# --------------------------------------------------------------------------
# Kernels
# --------------------------------------------------------------------------

def _swiglu_kernel_single(x_ref, w1_ref, w3_ref, w2_ref, o_ref):
    """Whole d_ff in one step: no accumulator, write the output directly."""
    # x_ref:  (TM, d_model)     w1_ref/w3_ref: (d_model, d_ff)
    # w2_ref: (d_ff, d_model)   o_ref: (TM, d_model)
    x = x_ref[...]
    hidden = jnp.dot(x, w1_ref[...], preferred_element_type=jnp.float32)
    gate = jnp.dot(x, w3_ref[...], preferred_element_type=jnp.float32)
    act = (hidden * jax.nn.sigmoid(hidden)) * gate          # SiLU * gate, f32
    o_ref[...] = jnp.dot(act.astype(w2_ref.dtype), w2_ref[...],
                         preferred_element_type=jnp.float32).astype(o_ref.dtype)


def _swiglu_kernel_acc(x_ref, w1_ref, w3_ref, w2_ref, o_ref, acc_ref):
    """d_ff tiled on the inner ('arbitrary') grid axis with a resident f32
    accumulator over the output row tile."""
    # x_ref:  (TM, d_model)       row tile (constant block across ff axis)
    # w1_ref: (d_model, TFF)      up-proj tile
    # w3_ref: (d_model, TFF)      gate-proj tile
    # w2_ref: (TFF, d_model)      down-proj tile
    # o_ref:  (TM, d_model)       output row tile (resident across ff axis)
    # acc_ref:(TM, d_model) f32   accumulator scratch
    ff = pl.program_id(1)

    @pl.when(ff == 0)
    def _init():
        acc_ref[...] = jnp.zeros_like(acc_ref)

    x = x_ref[...]
    hidden = jnp.dot(x, w1_ref[...], preferred_element_type=jnp.float32)
    gate = jnp.dot(x, w3_ref[...], preferred_element_type=jnp.float32)
    act = (hidden * jax.nn.sigmoid(hidden)) * gate
    acc_ref[...] += jnp.dot(act.astype(w2_ref.dtype), w2_ref[...],
                            preferred_element_type=jnp.float32)

    @pl.when(ff == pl.num_programs(1) - 1)
    def _finalize():
        o_ref[...] = acc_ref[...].astype(o_ref.dtype)


# --------------------------------------------------------------------------
# Tile / VMEM sizing
# --------------------------------------------------------------------------

@functools.lru_cache(maxsize=1)
def _vmem_limit_bytes() -> int:
    """Per-generation scoped VMEM request (leave headroom below physical)."""
    phys = 128 * 1024 * 1024
    try:
        info = pltpu.get_tpu_info()
        phys = int(getattr(info, "vmem_capacity_bytes", phys) or phys)
    except Exception:
        pass
    if phys <= 64 * 1024 * 1024:          # v7x-class: 64 MiB physical per TC
        return 48 * 1024 * 1024
    return 96 * 1024 * 1024               # v5e / v6e: 128 MiB physical


def _pick_tiles(m, d_model, x_bytes, w_bytes, budget, tm_hint):
    """Pick the row tile and the max d_ff tile that fit the VMEM budget.

    Working-set model (conservative: x/out counted double-buffered):
      fixed  = tm * d_model * (4 * x_bytes + 4)          # x, out, f32 acc
      per_ff = 6 * d_model * w_bytes                     # w1t,w3t,w2t x2 bufs
    """
    tm = _round_up(min(tm_hint, _round_up(m, 8)), 8)
    per_ff = 6 * d_model * w_bytes
    while True:
        fixed = tm * d_model * (4 * x_bytes + 4)
        avail = budget - fixed
        tff_budget = avail // per_ff if avail > 0 else 0
        if tff_budget >= 128 or tm <= 8:
            break
        tm = max(8, _round_up(tm // 2, 8))
    return tm, max(128, int(tff_budget))


# --------------------------------------------------------------------------
# Wrapper
# --------------------------------------------------------------------------

@functools.partial(jax.jit,
                   static_argnames=("tile_m", "tile_ff", "weight_dtype"))
def swiglu_pallas(x, w1, w2, w3, *, tile_m=512, tile_ff=512, weight_dtype=None):
    """x: (..., d_model) -> (..., d_model).  Weights in PyTorch layout:
    w1, w3: (d_ff, d_model);  w2: (d_model, d_ff).

    weight_dtype: optional dtype (e.g. jnp.bfloat16) to cast the weights to
    once in the wrapper (halves weight HBM traffic / VMEM footprint while
    keeping f32 MXU accumulation).  Default None keeps exact semantics.
    """
    d_ff, d_model = w1.shape
    assert w2.shape == (d_model, d_ff)
    assert w3.shape == (d_ff, d_model)
    orig_shape = x.shape
    assert orig_shape[-1] == d_model

    if weight_dtype is not None:
        w1 = w1.astype(weight_dtype)
        w2 = w2.astype(weight_dtype)
        w3 = w3.astype(weight_dtype)

    # One-time weight relayout: contract the RHS *leading* dim in-kernel
    # (native MXU layout, no per-step vxpose).
    w1t = w1.T            # (d_model, d_ff)
    w3t = w3.T            # (d_model, d_ff)
    w2t = w2.T            # (d_ff, d_model)

    x2d = x.reshape(-1, d_model)
    m = x2d.shape[0]

    vmem_limit = _vmem_limit_bytes()
    budget = int(vmem_limit * 0.85)           # headroom for Mosaic scratch
    tm, tff_budget = _pick_tiles(m, d_model, x.dtype.itemsize,
                                 w1t.dtype.itemsize, budget, tile_m)

    # Megacore: ensure >= 2 blocks on the parallel row axis when possible.
    m_pad = _round_up(m, tm)
    if m_pad // tm < 2 and tm > 8:
        tm = max(8, _round_up(tm // 2, 8))
        m_pad = _round_up(m, tm)
    if m_pad != m:
        x2d = jnp.pad(x2d, ((0, m_pad - m), (0, 0)))
    grid_m = m_pad // tm

    tff_cap = min(tff_budget, max(128, (tile_ff // 128) * 128))

    if d_ff <= tff_cap:
        # ---- Single d_ff step: full weights resident, no accumulator RMW.
        out2d = pl.pallas_call(
            _swiglu_kernel_single,
            out_shape=jax.ShapeDtypeStruct((m_pad, d_model), x.dtype),
            grid_spec=pltpu.PrefetchScalarGridSpec(
                num_scalar_prefetch=0,
                grid=(grid_m,),
                in_specs=[
                    pl.BlockSpec((tm, d_model), lambda i: (i, 0)),      # x rows
                    pl.BlockSpec((d_model, d_ff), lambda i: (0, 0)),    # w1^T
                    pl.BlockSpec((d_model, d_ff), lambda i: (0, 0)),    # w3^T
                    pl.BlockSpec((d_ff, d_model), lambda i: (0, 0)),    # w2^T
                ],
                out_specs=pl.BlockSpec((tm, d_model), lambda i: (i, 0)),
            ),
            compiler_params=pltpu.CompilerParams(
                dimension_semantics=("parallel",),
                vmem_limit_bytes=vmem_limit,
            ),
        )(x2d, w1t, w3t, w2t)
    else:
        # ---- d_ff tiled on an inner "arbitrary" axis with f32 accumulator.
        tff = tff_cap
        ff_pad = _round_up(d_ff, tff)
        if ff_pad != d_ff:
            # Zero-padding d_ff is exact: padded columns give hidden==gate==0
            # -> act==0 -> contribute nothing to the down-projection sum.
            w1t = jnp.pad(w1t, ((0, 0), (0, ff_pad - d_ff)))
            w3t = jnp.pad(w3t, ((0, 0), (0, ff_pad - d_ff)))
            w2t = jnp.pad(w2t, ((0, ff_pad - d_ff), (0, 0)))

        out2d = pl.pallas_call(
            _swiglu_kernel_acc,
            out_shape=jax.ShapeDtypeStruct((m_pad, d_model), x.dtype),
            grid_spec=pltpu.PrefetchScalarGridSpec(
                num_scalar_prefetch=0,
                grid=(grid_m, ff_pad // tff),
                in_specs=[
                    pl.BlockSpec((tm, d_model), lambda i, f: (i, 0)),   # x rows
                    pl.BlockSpec((d_model, tff), lambda i, f: (0, f)),  # w1^T
                    pl.BlockSpec((d_model, tff), lambda i, f: (0, f)),  # w3^T
                    pl.BlockSpec((tff, d_model), lambda i, f: (f, 0)),  # w2^T
                ],
                out_specs=pl.BlockSpec((tm, d_model), lambda i, f: (i, 0)),
                scratch_shapes=[pltpu.VMEM((tm, d_model), jnp.float32)],
            ),
            compiler_params=pltpu.CompilerParams(
                dimension_semantics=("parallel", "arbitrary"),
                vmem_limit_bytes=vmem_limit,
            ),
        )(x2d, w1t, w3t, w2t)

    return out2d[:m].reshape(orig_shape)


# --------------------------------------------------------------------------
# Reference + init
# --------------------------------------------------------------------------

def swiglu_ref(x, w1, w2, w3):
    """Pure-JAX reference matching the PyTorch forward."""
    hidden = jnp.einsum('fd,...d->...f', w1, x)
    silu = hidden * jax.nn.sigmoid(hidden)
    gate = jnp.einsum('fd,...d->...f', w3, x)
    return jnp.einsum('df,...f->...d', w2, silu * gate)


def init_params(key, d_model, d_ff, dtype=jnp.float32):
    """trunc_normal(0, sigma) truncated at +-3*sigma (torch.nn.init.trunc_normal_)."""
    sigma = math.sqrt(2.0 / (d_model + d_ff))
    k1, k2, k3 = jax.random.split(key, 3)
    w1 = sigma * jax.random.truncated_normal(k1, -3.0, 3.0, (d_ff, d_model), dtype)
    w2 = sigma * jax.random.truncated_normal(k2, -3.0, 3.0, (d_model, d_ff), dtype)
    w3 = sigma * jax.random.truncated_normal(k3, -3.0, 3.0, (d_ff, d_model), dtype)
    return w1, w2, w3


if __name__ == "__main__":
    key = jax.random.PRNGKey(0)

    # --- Test 1: small shapes implied by the module (single-step path). ---
    d_model, d_ff = 32, 64
    batch, seq = 2, 8
    k_w, k_x, key = jax.random.split(key, 3)
    w1, w2, w3 = init_params(k_w, d_model, d_ff, jnp.float32)
    x = jax.random.normal(k_x, (batch, seq, d_model), jnp.float32)

    out = jax.block_until_ready(swiglu_pallas(x, w1, w2, w3))
    ref = swiglu_ref(x, w1, w2, w3)
    assert out.shape == (batch, seq, d_model)
    assert jnp.allclose(out, ref, atol=2e-5, rtol=1e-5), \
        f"test1 max abs err {jnp.max(jnp.abs(out - ref))}"

    # --- Test 2: row padding + forced d_ff tiling/padding + accumulator. ---
    d_model2, d_ff2 = 128, 192
    k_w2, k_x2, key = jax.random.split(key, 3)
    w1b, w2b, w3b = init_params(k_w2, d_model2, d_ff2, jnp.float32)
    x2 = jax.random.normal(k_x2, (3, 5, d_model2), jnp.float32)

    out2 = jax.block_until_ready(
        swiglu_pallas(x2, w1b, w2b, w3b, tile_m=256, tile_ff=128))
    ref2 = swiglu_ref(x2, w1b, w2b, w3b)
    assert out2.shape == (3, 5, d_model2)
    assert jnp.allclose(out2, ref2, atol=1e-4, rtol=1e-4), \
        f"test2 max abs err {jnp.max(jnp.abs(out2 - ref2))}"

    print("KERNEL_OK")
</pallas_src>

<mosaic_0001>
module attributes {stable_mosaic.version = 11 : i64} {
  func.func @_swiglu_kernel_single(%arg0: i32, %arg1: memref<8x32xf32, #tpu.memory_space<vmem>>, %arg2: memref<32x64xf32, #tpu.memory_space<vmem>>, %arg3: memref<32x64xf32, #tpu.memory_space<vmem>>, %arg4: memref<64x32xf32, #tpu.memory_space<vmem>>, %arg5: memref<8x32xf32, #tpu.memory_space<vmem>>) attributes {dimension_semantics = [#tpu.dimension_semantics<parallel>], iteration_bounds = array<i64: 2>, scalar_prefetch = 0 : i64, scratch_operands = 0 : i64, tpu.core_type = #tpu.core_type<tc>, window_params = [{transform_indices = @transform_0, window_bounds = array<i64: 8, 32>}, {pipeline_mode = #tpu.pipeline_mode<synchronous>, transform_indices = @transform_1, window_bounds = array<i64: 32, 64>}, {pipeline_mode = #tpu.pipeline_mode<synchronous>, transform_indices = @transform_2, window_bounds = array<i64: 32, 64>}, {pipeline_mode = #tpu.pipeline_mode<synchronous>, transform_indices = @transform_3, window_bounds = array<i64: 64, 32>}, {transform_indices = @transform_4, window_bounds = array<i64: 8, 32>}]} {
    %c0 = arith.constant 0 : index
    %c0_0 = arith.constant 0 : index
    %0 = vector.load %arg1[%c0, %c0_0] : memref<8x32xf32, #tpu.memory_space<vmem>>, vector<8x32xf32>
    %c0_1 = arith.constant 0 : index
    %c0_2 = arith.constant 0 : index
    %1 = vector.load %arg2[%c0_1, %c0_2] : memref<32x64xf32, #tpu.memory_space<vmem>>, vector<32x64xf32>
    %cst = arith.constant dense<0.000000e+00> : vector<8x64xf32>
    %2 = tpu.matmul %0, %1, %cst {dimension_numbers = #tpu.dot_dimension_numbers<[1], [0], [0], [1], [0, 0, 1, 1], [], []>} : vector<8x32xf32>, vector<32x64xf32>, vector<8x64xf32> -> vector<8x64xf32>
    %c0_3 = arith.constant 0 : index
    %c0_4 = arith.constant 0 : index
    %3 = vector.load %arg3[%c0_3, %c0_4] : memref<32x64xf32, #tpu.memory_space<vmem>>, vector<32x64xf32>
    %cst_5 = arith.constant dense<0.000000e+00> : vector<8x64xf32>
    %4 = tpu.matmul %0, %3, %cst_5 {dimension_numbers = #tpu.dot_dimension_numbers<[1], [0], [0], [1], [0, 0, 1, 1], [], []>} : vector<8x32xf32>, vector<32x64xf32>, vector<8x64xf32> -> vector<8x64xf32>
    %5 = arith.negf %2 : vector<8x64xf32>
    %6 = math.exp %5 : vector<8x64xf32>
    %cst_6 = arith.constant 1.000000e+00 : f32
    %7 = vector.broadcast %cst_6 : f32 to vector<8x64xf32>
    %8 = arith.addf %7, %6 : vector<8x64xf32>
    %9 = arith.divf %7, %8 : vector<8x64xf32>
    %10 = arith.mulf %2, %9 : vector<8x64xf32>
    %11 = arith.mulf %10, %4 : vector<8x64xf32>
    %c0_7 = arith.constant 0 : index
    %c0_8 = arith.constant 0 : index
    %12 = vector.load %arg4[%c0_7, %c0_8] : memref<64x32xf32, #tpu.memory_space<vmem>>, vector<64x32xf32>
    %cst_9 = arith.constant dense<0.000000e+00> : vector<8x32xf32>
    %13 = tpu.matmul %11, %12, %cst_9 {dimension_numbers = #tpu.dot_dimension_numbers<[1], [0], [0], [1], [0, 0, 1, 1], [], []>} : vector<8x64xf32>, vector<64x32xf32>, vector<8x32xf32> -> vector<8x32xf32>
    %c0_10 = arith.constant 0 : index
    %c0_11 = arith.constant 0 : index
    %14 = vector.load %arg5[%c0_10, %c0_11] : memref<8x32xf32, #tpu.memory_space<vmem>>, vector<8x32xf32>
    tpu.vector_store %arg5[%c0_10, %c0_11], %13 {strides = array<i32>} : memref<8x32xf32, #tpu.memory_space<vmem>>, vector<8x32xf32>,
    return
  }
  func.func @transform_0(%arg0: i32) -> (i32, i32) {
    %c0_i32 = arith.constant 0 : i32
    %c0_i32_0 = arith.constant 0 : i32
    return %arg0, %c0_i32 : i32, i32
  }
  func.func @transform_1(%arg0: i32) -> (i32, i32) {
    %c0_i32 = arith.constant 0 : i32
    %c0_i32_0 = arith.constant 0 : i32
    %c0_i32_1 = arith.constant 0 : i32
    return %c0_i32, %c0_i32_0 : i32, i32
  }
  func.func @transform_2(%arg0: i32) -> (i32, i32) {
    %c0_i32 = arith.constant 0 : i32
    %c0_i32_0 = arith.constant 0 : i32
    %c0_i32_1 = arith.constant 0 : i32
    return %c0_i32, %c0_i32_0 : i32, i32
  }
  func.func @transform_3(%arg0: i32) -> (i32, i32) {
    %c0_i32 = arith.constant 0 : i32
    %c0_i32_0 = arith.constant 0 : i32
    %c0_i32_1 = arith.constant 0 : i32
    return %c0_i32, %c0_i32_0 : i32, i32
  }
  func.func @transform_4(%arg0: i32) -> (i32, i32) {
    %c0_i32 = arith.constant 0 : i32
    %c0_i32_0 = arith.constant 0 : i32
    return %arg0, %c0_i32 : i32, i32
  }
}

</mosaic_0001>

<llo_original>
// kernel: swiglu_pallas.1
$region0: #{swiglu_pallas.1}
  #allocation0 [shape = 'u32[]', space=smem, size = 0x4, offset = 0x4, fixed_abs, tag = 'smem constant byte address 0x4 - core index']
  #allocation1 [shape = 'u32[144,128]{1,0:T(1,128)}', space=vmem, size = 0x12000, scoped, tag = 'internal scratch']
  %s0 = inlined_call_operand.hbm [shape: f32[16,32], index: 0, kind: input, shape index: {}]
  %s1 = inlined_call_operand.hbm [shape: f32[32,64], index: 1, kind: input, shape index: {}]
  %s2 = inlined_call_operand.hbm [shape: f32[32,64], index: 2, kind: input, shape index: {}]
  %s3 = inlined_call_operand.hbm [shape: f32[64,32], index: 3, kind: input, shape index: {}]
  %s4 = inlined_call_operand.hbm [shape: f32[16,32], index: 4, kind: output, shape index: {}]
  %s5 = sld [smem:[#allocation0]]
  $region65: #{swiglu_pallas.1} parent=0
    _
  %s7 = ssub.s32 1, %s5
  %s8 = scalar_select 0, %s7, %s5
  $region1: #{swiglu_pallas.1} parent=0
    #allocation2 [shape = 'u8[8192]{0}', space=vmem, size = 0x2000, scoped, tag = 'input window, operand 0']
    #allocation3 [shape = 's32[2]{0}', space=sflag, size = 0x8, scoped, tag = 'scoped memory for swiglu_pallas.1']
    #allocation4 [shape = 's32[2]{0}', space=sflag, size = 0x8, scoped, tag = 'scoped memory for swiglu_pallas.1']
    #allocation5 [shape = 'u8[16384]{0}', space=vmem, size = 0x4000, scoped, tag = 'input window, operand 1, single buffered']
    #allocation6 [shape = 's32[1]{0}', space=sflag, size = 0x4, scoped, tag = 'scoped memory for swiglu_pallas.1']
    #allocation7 [shape = 'u8[16384]{0}', space=vmem, size = 0x4000, scoped, tag = 'input window, operand 2, single buffered']
    #allocation8 [shape = 'u8[32768]{0}', space=vmem, size = 0x8000, scoped, tag = 'input window, operand 3, single buffered']
    #allocation9 [shape = 's32[1]{0}', space=sflag, size = 0x4, scoped, tag = 'scoped memory for swiglu_pallas.1']
    #allocation10 [shape = 'u8[8192]{0}', space=vmem, size = 0x2000, scoped, tag = 'output window, operand 0']
    %9 = vsyncpa [#allocation3], 0
    %s10 = scalar_lea.sflag [#allocation3], 1
    %11 = vsyncpa %s10, 0
    %12 = vsyncpa [#allocation6], 0
    %13 = vsyncpa [#allocation9], 0
    %14 = vsyncpa [#allocation4], 0
    %s15 = scalar_lea.sflag [#allocation4], 1
    %16 = vsyncpa %s15, 0
    loop: start=0, step=1, limit=4
    $region2: #{swiglu_pallas.1} parent=1 // loop_pre_header
      _
    $region3: #{swiglu_pallas.1} parent=1 // loop_header
      %s18 = sphi 0, %s22
      %p19 = scmp.ge.s32.totalorder %s18, 4
      %s28 = sphi 0, %s30
      %s31 = sphi 0, %s28
      %s32 = sphi 0, %s31
      %s48 = sphi 0, %s32
      %s52 = sphi 0, %s52
      %s54 = sphi 0, %s52
      %s55 = sphi 0, %s54
      %s69 = sphi 0, %s55
      %s73 = sphi 0, %s73
      %s75 = sphi 0, %s73
      %s76 = sphi 0, %s75
      %s90 = sphi 0, %s76
      %s94 = sphi 0, %s94
      %s96 = sphi 0, %s94
      %s97 = sphi 0, %s96
      %s111 = sphi 0, %s97
      %s117 = sphi 0, %s119
      %s120 = sphi 0, %s117
      %s121 = sphi 0, %s120
      %s137 = sphi 0, %s121
    $region4: #{swiglu_pallas.1} parent=1 // loop_header_branch
      %21 = sbr.rel (%p19) target = $region8
    $region5: #{swiglu_pallas.1} parent=1 // loop_body
      %s23 = ssub.s32 %s18, 1
      %s24 = ssub.s32 %s18, 2
      %s25 = sadd.s32 %s18, 1
      %s26 = ssub.s32 %s18, %s25
      %p27 = scmp.eq.s32.totalorder %s26, 0
      %s29 = sadd.s32 %s28, 1
      %s30 = scalar_select %p27, %s28, %s29
      %p33 = pneg %p27
      %p34 = scmp.eq.s32.totalorder %s18, 1
      %p35 = por %p33, %p34
      %p36 = scmp.ne.s32.totalorder %s28, %s31
      %p37 = scmp.eq.s32.totalorder %s18, 0
      %p38 = por %p36, %p37
      %p39 = scmp.ne.s32.totalorder %s28, %s31
      %p40 = scmp.eq.s32.totalorder %s23, 1
      %p41 = por %p39, %p40
      %p42 = scmp.ne.s32.totalorder %s31, %s32
      %p43 = scmp.eq.s32.totalorder %s23, 0
      %p44 = por %p42, %p43
      %p45 = scmp.ne.s32.totalorder %s31, %s32
      %p46 = scmp.eq.s32.totalorder %s24, 1
      %p47 = por %p45, %p46
      %p49 = scmp.ne.s32.totalorder %s32, %s48
      %p50 = scmp.eq.s32.totalorder %s24, 0
      %p51 = por %p49, %p50
      %s53 = sadd.s32 %s52, 1
      %p56 = scmp.eq.s32.totalorder %s18, 1
      %p57 = scmp.ne.s32.totalorder %s52, %s54
      %p58 = scmp.eq.s32.totalorder %s18, 0
      %p59 = por %p57, %p58
      %p60 = scmp.ne.s32.totalorder %s52, %s54
      %p61 = scmp.eq.s32.totalorder %s23, 1
      %p62 = por %p60, %p61
      %p63 = scmp.ne.s32.totalorder %s54, %s55
      %p64 = scmp.eq.s32.totalorder %s23, 0
      %p65 = por %p63, %p64
      %p66 = scmp.ne.s32.totalorder %s54, %s55
      %p67 = scmp.eq.s32.totalorder %s24, 1
      %p68 = por %p66, %p67
      %p70 = scmp.ne.s32.totalorder %s55, %s69
      %p71 = scmp.eq.s32.totalorder %s24, 0
      %p72 = por %p70, %p71
      %s74 = sadd.s32 %s73, 1
      %p77 = scmp.eq.s32.totalorder %s18, 1
      %p78 = scmp.ne.s32.totalorder %s73, %s75
      %p79 = scmp.eq.s32.totalorder %s18, 0
      %p80 = por %p78, %p79
      %p81 = scmp.ne.s32.totalorder %s73, %s75
      %p82 = scmp.eq.s32.totalorder %s23, 1
      %p83 = por %p81, %p82
      %p84 = scmp.ne.s32.totalorder %s75, %s76
      %p85 = scmp.eq.s32.totalorder %s23, 0
      %p86 = por %p84, %p85
      %p87 = scmp.ne.s32.totalorder %s75, %s76
      %p88 = scmp.eq.s32.totalorder %s24, 1
      %p89 = por %p87, %p88
      %p91 = scmp.ne.s32.totalorder %s76, %s90
      %p92 = scmp.eq.s32.totalorder %s24, 0
      %p93 = por %p91, %p92
      %s95 = sadd.s32 %s94, 1
      %p98 = scmp.eq.s32.totalorder %s18, 1
      %p99 = scmp.ne.s32.totalorder %s94, %s96
      %p100 = scmp.eq.s32.totalorder %s18, 0
      %p101 = por %p99, %p100
      %p102 = scmp.ne.s32.totalorder %s94, %s96
      %p103 = scmp.eq.s32.totalorder %s23, 1
      %p104 = por %p102, %p103
      %p105 = scmp.ne.s32.totalorder %s96, %s97
      %p106 = scmp.eq.s32.totalorder %s23, 0
      %p107 = por %p105, %p106
      %p108 = scmp.ne.s32.totalorder %s96, %s97
      %p109 = scmp.eq.s32.totalorder %s24, 1
      %p110 = por %p108, %p109
      %p112 = scmp.ne.s32.totalorder %s97, %s111
      %p113 = scmp.eq.s32.totalorder %s24, 0
      %p114 = por %p112, %p113
      %s115 = ssub.s32 %s18, %s25
      %p116 = scmp.eq.s32.totalorder %s115, 0
      %s118 = sadd.s32 %s117, 1
      %s119 = scalar_select %p116, %s117, %s118
      %p122 = pneg %p116
      %p123 = scmp.eq.s32.totalorder %s18, 1
      %p124 = por %p122, %p123
      %p125 = scmp.ne.s32.totalorder %s117, %s120
      %p126 = scmp.eq.s32.totalorder %s18, 0
      %p127 = por %p125, %p126
      %p128 = scmp.ne.s32.totalorder %s117, %s120
      %p129 = scmp.eq.s32.totalorder %s23, 1
      %p130 = por %p128, %p129
      %p131 = scmp.ne.s32.totalorder %s120, %s121
      %p132 = scmp.eq.s32.totalorder %s23, 0
      %p133 = por %p131, %p132
      %p134 = scmp.ne.s32.totalorder %s120, %s121
      %p135 = scmp.eq.s32.totalorder %s24, 1
      %p136 = por %p134, %p135
      %p138 = scmp.ne.s32.totalorder %s121, %s137
      %p139 = scmp.eq.s32.totalorder %s24, 0
      %p140 = por %p138, %p139
      %p141 = scmp.le.s32.totalorder 1, %s18
      %p142 = scmp.lt.s32.totalorder %s18, 3
      %p143 = pnand %p141, %p142
      %p144 = pneg %p143
      // Predicated region
      $region9: #{swiglu_pallas.1} parent=5 // pred_check
        _
      $region10: #{swiglu_pallas.1} parent=5 // pred_check_branch
        %146 = sbr.rel (%p143) target = $region12
      $region11: #{swiglu_pallas.1} parent=5 // pred_region
        %s147 = ssub.s32 %s18, 1
        // Predicated region
        $region13: #{swiglu_pallas.1} parent=11 // pred_check
          %p148 = pneg %p65
        $region14: #{swiglu_pallas.1} parent=11 // pred_check_branch
          %150 = sbr.rel (%p148) target = $region16
        $region15: #{swiglu_pallas.1} parent=11 // pred_region
          %s152 = ssub.s32 512, 512
          %153 = vsyncadd [#allocation6], %s152
          %s154 = sshll.u32 [#allocation5], 4
          %s155 = int_to_ptr.vmem [resolvable:$true] %s154
          %160 = dma.hbm_to_vmem [thread:$0]  %s1, 512, %s155, [#allocation6], 128, 128, 8
        $region16: #{swiglu_pallas.1} parent=11 // pred_fallthru
          _
        // Predicated region
        $region17: #{swiglu_pallas.1} parent=11 // pred_check
          %p161 = pneg %p86
        $region18: #{swiglu_pallas.1} parent=11 // pred_check_branch
          %163 = sbr.rel (%p161) target = $region20
        $region19: #{swiglu_pallas.1} parent=11 // pred_region
          %s165 = ssub.s32 512, 512
          %166 = vsyncadd [#allocation6], %s165
          %s167 = sshll.u32 [#allocation7], 4
          %s168 = int_to_ptr.vmem [resolvable:$true] %s167
          %173 = dma.hbm_to_vmem [thread:$0]  %s2, 512, %s168, [#allocation6], 128, 128, 8
        $region20: #{swiglu_pallas.1} parent=11 // pred_fallthru
          _
        // Predicated region
        $region21: #{swiglu_pallas.1} parent=11 // pred_check
          %p174 = pneg %p107
        $region22: #{swiglu_pallas.1} parent=11 // pred_check_branch
          %176 = sbr.rel (%p174) target = $region24
        $region23: #{swiglu_pallas.1} parent=11 // pred_region
          %s178 = ssub.s32 1024, 1024
          %179 = vsyncadd [#allocation9], %s178
          %s180 = sshll.u32 [#allocation8], 4
          %s181 = int_to_ptr.vmem [resolvable:$true] %s180
          %186 = dma.hbm_to_vmem [thread:$0]  %s3, 1024, %s181, [#allocation9], 128, 128, 8
        $region24: #{swiglu_pallas.1} parent=11 // pred_fallthru
          _
      $region12: #{swiglu_pallas.1} parent=5 // pred_fallthru
        _
      %p187 = scmp.lt.s32.totalorder %s18, 2
      // Predicated region
      $region25: #{swiglu_pallas.1} parent=5 // pred_check
        %p188 = pneg %p187
      $region26: #{swiglu_pallas.1} parent=5 // pred_check_branch
        %190 = sbr.rel (%p188) target = $region28
      $region27: #{swiglu_pallas.1} parent=5 // pred_region
        // Predicated region
        $region29: #{swiglu_pallas.1} parent=27 // pred_check
          %p191 = pneg %p38
        $region30: #{swiglu_pallas.1} parent=27 // pred_check_branch
          %193 = sbr.rel (%p191) target = $region32
        $region31: #{swiglu_pallas.1} parent=27 // pred_region
          %s194 = sand.u32 %s28, 1
          %s195 = scalar_lea.sflag [#allocation3], %s194
          %s196 = sand.u32 %s28, 1
          %s197 = smul.addr %s196, 8
          %s198 = scalar_lea.vmem [#allocation2], %s197
          %s200 = ssub.s32 128, 128
          %201 = vsyncadd %s195, %s200
          %s202 = smul.addr %s18, 128
          %s203 = scalar_lea.hbm %s0, %s202
          %s205 = sshll.u32 %s198, 4
          %s206 = int_to_ptr.vmem [resolvable:$true] %s205
          %208 = dma.hbm_to_vmem [thread:$0]  %s203, 128, %s206, %s195
        $region32: #{swiglu_pallas.1} parent=27 // pred_fallthru
          _
      $region28: #{swiglu_pallas.1} parent=5 // pred_fallthru
        _
      %p209 = scmp.le.s32.totalorder 1, %s18
      %p210 = scmp.lt.s32.totalorder %s18, 3
      %p211 = pnand %p209, %p210
      %p212 = pneg %p211
      // Predicated region
      $region33: #{swiglu_pallas.1} parent=5 // pred_check
        _
      $region34: #{swiglu_pallas.1} parent=5 // pred_check_branch
        %214 = sbr.rel (%p211) target = $region36
      $region35: #{swiglu_pallas.1} parent=5 // pred_region
        %s215 = ssub.s32 %s18, 1
        %s216 = sand.u32 %s31, 1
        %s217 = scalar_lea.sflag [#allocation3], %s216
        %s218 = sand.u32 %s31, 1
        %s219 = smul.addr %s218, 8
        %s220 = scalar_lea.vmem [#allocation2], %s219
        // Predicated region
        $region37: #{swiglu_pallas.1} parent=35 // pred_check
          %p221 = pneg %p44
        $region38: #{swiglu_pallas.1} parent=35 // pred_check_branch
          %223 = sbr.rel (%p221) target = $region40
        $region39: #{swiglu_pallas.1} parent=35 // pred_region
          %224 = dma.done %s217, 128
        $region40: #{swiglu_pallas.1} parent=35 // pred_fallthru
          _
        // Predicated region
        $region41: #{swiglu_pallas.1} parent=35 // pred_check
          %p225 = pneg %p65
        $region42: #{swiglu_pallas.1} parent=35 // pred_check_branch
          %227 = sbr.rel (%p225) target = $region44
        $region43: #{swiglu_pallas.1} parent=35 // pred_region
          %228 = dma.done [#allocation6], 512
        $region44: #{swiglu_pallas.1} parent=35 // pred_fallthru
          _
        // Predicated region
        $region45: #{swiglu_pallas.1} parent=35 // pred_check
          %p229 = pneg %p86
        $region46: #{swiglu_pallas.1} parent=35 // pred_check_branch
          %231 = sbr.rel (%p229) target = $region48
        $region47: #{swiglu_pallas.1} parent=35 // pred_region
          %232 = dma.done [#allocation6], 512
        $region48: #{swiglu_pallas.1} parent=35 // pred_fallthru
          _
        // Predicated region
        $region49: #{swiglu_pallas.1} parent=35 // pred_check
          %p233 = pneg %p107
        $region50: #{swiglu_pallas.1} parent=35 // pred_check_branch
          %235 = sbr.rel (%p233) target = $region52
        $region51: #{swiglu_pallas.1} parent=35 // pred_region
          %236 = dma.done [#allocation9], 1024
        $region52: #{swiglu_pallas.1} parent=35 // pred_fallthru
          _
        %s237 = sand.u32 %s31, 1
        %s238 = scalar_lea.sflag [#allocation3], %s237
        %s239 = sand.u32 %s31, 1
        %s240 = smul.addr %s239, 8
        %s241 = scalar_lea.vmem [#allocation2], %s240
        %p242 = pneg %p44
        %p243 = pneg %p41
        %p244 = pneg %p65
        %p245 = pneg %p62
        %p246 = pneg %p86
        %p247 = pneg %p83
        %p248 = pneg %p107
        %p249 = pneg %p104
        %p250 = pneg %p133
        %p251 = pneg %p130
        %s252 = sand.u32 %s120, 1
        %s253 = scalar_lea.sflag [#allocation4], %s252
        %s254 = sand.u32 %s120, 1
        %s255 = smul.addr %s254, 8
        %s256 = scalar_lea.vmem [#allocation10], %s255
        %v257 = vld [vmem:[%s220] sm:$0xff]
        %v258 = vld [vmem:[#allocation5] sm:$0xff]
        %v259 = vld [vmem:[#allocation5 + $0x8] sm:$0xff]
        %v260 = vld [vmem:[#allocation5 + $0x10] sm:$0xff]
        %v261 = vld [vmem:[#allocation5 + $0x18] sm:$0xff]
        %vm262 = vcmask 261120
        %v264 = vsel %vm262, %v257, 0
        %266 = vmatprep.subr.mxu0 0.0
        %267 = vmatpush1.msra.mxu0 %v258
        %268 = vmatprep.subr.mxu0 0.0
        %269 = vmatpush1.msra.mxu0 %v259
        %270 = vmatprep.subr.mxu0 0.0
        %271 = vmatpush1.msra.mxu0 %v260
        %272 = vmatprep.subr.mxu0 0.0
        %273 = vmatpush1.msra.mxu0 %v261
        %274 = vmatprep.subr.mxu0 0.0
        %275 = vmatpush1.msra.mxu0 0.0
        %276 = vmatprep.subr.mxu0 0.0
        %277 = vmatpush1.msra.mxu0 0.0
        %278 = vmatprep.subr.mxu0 0.0
        %279 = vmatpush1.msra.mxu0 0.0
        %280 = vmatprep.subr.mxu0 0.0
        %281 = vmatpush1.msra.mxu0 0.0
        %282 = vmatprep.subr.mxu0 0.0
        %283 = vmatpush1.msra.mxu0 0.0
        %284 = vmatprep.subr.mxu0 0.0
        %285 = vmatpush1.msra.mxu0 0.0
        %286 = vmatprep.subr.mxu0 0.0
        %287 = vmatpush1.msra.mxu0 0.0
        %288 = vmatprep.subr.mxu0 0.0
        %289 = vmatpush1.msra.mxu0 0.0
        %290 = vmatprep.subr.mxu0 0.0
        %291 = vmatpush1.msra.mxu0 0.0
        %292 = vmatprep.subr.mxu0 0.0
        %293 = vmatpush1.msra.mxu0 0.0
        %294 = vmatprep.subr.mxu0 0.0
        %295 = vmatpush1.msra.mxu0 0.0
        %296 = vmatprep.subr.mxu0 0.0
        %297 = vmatpush1.msra.mxu0 0.0
        %298 = vmatprep.subr.mxu0 0.0
        %299 = vmatpush1.msra.mxu0 0.0
        %300 = vmatprep.subr.mxu0 0.0
        %301 = vmatpush1.msra.mxu0 0.0
        %302 = vmatprep.subr.mxu0 0.0
        %303 = vmatpush1.msra.mxu0 0.0
        %304 = vmatprep.subr.mxu0 0.0
        %305 = vmatpush1.msra.mxu0 0.0
        %306 = vmatprep.subr.mxu0 0.0
        %307 = vmatpush1.msra.mxu0 0.0
        %308 = vmatprep.subr.mxu0 0.0
        %309 = vmatpush1.msra.mxu0 0.0
        %310 = vmatprep.subr.mxu0 0.0
        %311 = vmatpush1.msra.mxu0 0.0
        %312 = vmatprep.subr.mxu0 0.0
        %313 = vmatpush1.msra.mxu0 0.0
        %314 = vmatprep.subr.mxu0 0.0
        %315 = vmatpush1.msra.mxu0 0.0
        %316 = vmatprep.subr.mxu0 0.0
        %317 = vmatpush1.msra.mxu0 0.0
        %318 = vmatprep.subr.mxu0 0.0
        %319 = vmatpush1.msra.mxu0 0.0
        %320 = vmatprep.subr.mxu0 0.0
        %321 = vmatpush1.msra.mxu0 0.0
        %322 = vmatprep.subr.mxu0 0.0
        %323 = vmatpush1.msra.mxu0 0.0
        %324 = vmatprep.subr.mxu0 0.0
        %325 = vmatpush1.msra.mxu0 0.0
        %326 = vmatprep.subr.mxu0 0.0
        %327 = vmatpush1.msra.mxu0 0.0
        %328 = vmatprep.subr.mxu0 0.0
        %329 = vmatpush1.msra.mxu0 0.0
        %330 = vmatprep.mubr.f32.mxu0 0.0
        %331 = vmatmul.mubr.f32.gmra.mrb[0].mxu0 %v264
        %v332 = vpop.f32.mrb[0].mxu0
        %v333 = vadd.f32 0.0, %v332
        %v334 = vpop.f32.mrb[0].mxu0
        %335 = vdwg.mxu0
        %v336 = vld [vmem:[#allocation7] sm:$0xff]
        %v337 = vld [vmem:[#allocation7 + $0x8] sm:$0xff]
        %v338 = vld [vmem:[#allocation7 + $0x10] sm:$0xff]
        %v339 = vld [vmem:[#allocation7 + $0x18] sm:$0xff]
        %340 = vmatprep.subr.mxu0 0.0
        %341 = vmatpush1.msra.mxu0 %v336
        %342 = vmatprep.subr.mxu0 0.0
        %343 = vmatpush1.msra.mxu0 %v337
        %344 = vmatprep.subr.mxu0 0.0
        %345 = vmatpush1.msra.mxu0 %v338
        %346 = vmatprep.subr.mxu0 0.0
        %347 = vmatpush1.msra.mxu0 %v339
        %348 = vmatprep.subr.mxu0 0.0
        %349 = vmatpush1.msra.mxu0 0.0
        %350 = vmatprep.subr.mxu0 0.0
        %351 = vmatpush1.msra.mxu0 0.0
        %352 = vmatprep.subr.mxu0 0.0
        %353 = vmatpush1.msra.mxu0 0.0
        %354 = vmatprep.subr.mxu0 0.0
        %355 = vmatpush1.msra.mxu0 0.0
        %356 = vmatprep.subr.mxu0 0.0
        %357 = vmatpush1.msra.mxu0 0.0
        %358 = vmatprep.subr.mxu0 0.0
        %359 = vmatpush1.msra.mxu0 0.0
        %360 = vmatprep.subr.mxu0 0.0
        %361 = vmatpush1.msra.mxu0 0.0
        %362 = vmatprep.subr.mxu0 0.0
        %363 = vmatpush1.msra.mxu0 0.0
        %364 = vmatprep.subr.mxu0 0.0
        %365 = vmatpush1.msra.mxu0 0.0
        %366 = vmatprep.subr.mxu0 0.0
        %367 = vmatpush1.msra.mxu0 0.0
        %368 = vmatprep.subr.mxu0 0.0
        %369 = vmatpush1.msra.mxu0 0.0
        %370 = vmatprep.subr.mxu0 0.0
        %371 = vmatpush1.msra.mxu0 0.0
        %372 = vmatprep.subr.mxu0 0.0
        %373 = vmatpush1.msra.mxu0 0.0
        %374 = vmatprep.subr.mxu0 0.0
        %375 = vmatpush1.msra.mxu0 0.0
        %376 = vmatprep.subr.mxu0 0.0
        %377 = vmatpush1.msra.mxu0 0.0
        %378 = vmatprep.subr.mxu0 0.0
        %379 = vmatpush1.msra.mxu0 0.0
        %380 = vmatprep.subr.mxu0 0.0
        %381 = vmatpush1.msra.mxu0 0.0
        %382 = vmatprep.subr.mxu0 0.0
        %383 = vmatpush1.msra.mxu0 0.0
        %384 = vmatprep.subr.mxu0 0.0
        %385 = vmatpush1.msra.mxu0 0.0
        %386 = vmatprep.subr.mxu0 0.0
        %387 = vmatpush1.msra.mxu0 0.0
        %388 = vmatprep.subr.mxu0 0.0
        %389 = vmatpush1.msra.mxu0 0.0
        %390 = vmatprep.subr.mxu0 0.0
        %391 = vmatpush1.msra.mxu0 0.0
        %392 = vmatprep.subr.mxu0 0.0
        %393 = vmatpush1.msra.mxu0 0.0
        %394 = vmatprep.subr.mxu0 0.0
        %395 = vmatpush1.msra.mxu0 0.0
        %396 = vmatprep.subr.mxu0 0.0
        %397 = vmatpush1.msra.mxu0 0.0
        %398 = vmatprep.subr.mxu0 0.0
        %399 = vmatpush1.msra.mxu0 0.0
        %400 = vmatprep.subr.mxu0 0.0
        %401 = vmatpush1.msra.mxu0 0.0
        %402 = vmatprep.subr.mxu0 0.0
        %403 = vmatpush1.msra.mxu0 0.0
        %404 = vmatprep.mubr.f32.mxu0 0.0
        %405 = vmatmul.mubr.f32.gmra.mrb[0].mxu0 %v264
        %v406 = vpop.f32.mrb[0].mxu0
        %v407 = vadd.f32 0.0, %v406
        %v408 = vpop.f32.mrb[0].mxu0
        %409 = vdwg.mxu0
        %v410 = vxor.u32 %v333, 2147483648
        %v411 = vmul.f32 %v410, 1.442695
        %v412 = vpow.pop %v411
        %v413 = vadd.f32 %v412, 1.0
        %v414 = vrcp.pop %v413
        %v415 = vmul.f32 1.0, %v414
        %v416 = vmul.f32 %v333, %v415
        %v417 = vmul.f32 %v416, %v407
        %v418 = vld [vmem:[#allocation8] sm:$0xff]
        %v419 = vld [vmem:[#allocation8 + $0x8] sm:$0xff]
        %v420 = vld [vmem:[#allocation8 + $0x10] sm:$0xff]
        %v421 = vld [vmem:[#allocation8 + $0x18] sm:$0xff]
        %v422 = vld [vmem:[#allocation8 + $0x20] sm:$0xff]
        %v423 = vld [vmem:[#allocation8 + $0x28] sm:$0xff]
        %v424 = vld [vmem:[#allocation8 + $0x30] sm:$0xff]
        %v425 = vld [vmem:[#allocation8 + $0x38] sm:$0xff]
        %vm426 = vcmask 523264
        %v428 = vsel %vm426, %v417, 0
        %430 = vmatprep.subr.mxu0 0.0
        %431 = vmatpush1.msra.mxu0 %v418
        %432 = vmatprep.subr.mxu0 0.0
        %433 = vmatpush1.msra.mxu0 %v419
        %434 = vmatprep.subr.mxu0 0.0
        %435 = vmatpush1.msra.mxu0 %v420
        %436 = vmatprep.subr.mxu0 0.0
        %437 = vmatpush1.msra.mxu0 %v421
        %438 = vmatprep.subr.mxu0 0.0
        %439 = vmatpush1.msra.mxu0 %v422
        %440 = vmatprep.subr.mxu0 0.0
        %441 = vmatpush1.msra.mxu0 %v423
        %442 = vmatprep.subr.mxu0 0.0
        %443 = vmatpush1.msra.mxu0 %v424
        %444 = vmatprep.subr.mxu0 0.0
        %445 = vmatpush1.msra.mxu0 %v425
        %446 = vmatprep.subr.mxu0 0.0
        %447 = vmatpush1.msra.mxu0 0.0
        %448 = vmatprep.subr.mxu0 0.0
        %449 = vmatpush1.msra.mxu0 0.0
        %450 = vmatprep.subr.mxu0 0.0
        %451 = vmatpush1.msra.mxu0 0.0
        %452 = vmatprep.subr.mxu0 0.0
        %453 = vmatpush1.msra.mxu0 0.0
        %454 = vmatprep.subr.mxu0 0.0
        %455 = vmatpush1.msra.mxu0 0.0
        %456 = vmatprep.subr.mxu0 0.0
        %457 = vmatpush1.msra.mxu0 0.0
        %458 = vmatprep.subr.mxu0 0.0
        %459 = vmatpush1.msra.mxu0 0.0
        %460 = vmatprep.subr.mxu0 0.0
        %461 = vmatpush1.msra.mxu0 0.0
        %462 = vmatprep.subr.mxu0 0.0
        %463 = vmatpush1.msra.mxu0 0.0
        %464 = vmatprep.subr.mxu0 0.0
        %465 = vmatpush1.msra.mxu0 0.0
        %466 = vmatprep.subr.mxu0 0.0
        %467 = vmatpush1.msra.mxu0 0.0
        %468 = vmatprep.subr.mxu0 0.0
        %469 = vmatpush1.msra.mxu0 0.0
        %470 = vmatprep.subr.mxu0 0.0
        %471 = vmatpush1.msra.mxu0 0.0
        %472 = vmatprep.subr.mxu0 0.0
        %473 = vmatpush1.msra.mxu0 0.0
        %474 = vmatprep.subr.mxu0 0.0
        %475 = vmatpush1.msra.mxu0 0.0
        %476 = vmatprep.subr.mxu0 0.0
        %477 = vmatpush1.msra.mxu0 0.0
        %478 = vmatprep.subr.mxu0 0.0
        %479 = vmatpush1.msra.mxu0 0.0
        %480 = vmatprep.subr.mxu0 0.0
        %481 = vmatpush1.msra.mxu0 0.0
        %482 = vmatprep.subr.mxu0 0.0
        %483 = vmatpush1.msra.mxu0 0.0
        %484 = vmatprep.subr.mxu0 0.0
        %485 = vmatpush1.msra.mxu0 0.0
        %486 = vmatprep.subr.mxu0 0.0
        %487 = vmatpush1.msra.mxu0 0.0
        %488 = vmatprep.subr.mxu0 0.0
        %489 = vmatpush1.msra.mxu0 0.0
        %490 = vmatprep.subr.mxu0 0.0
        %491 = vmatpush1.msra.mxu0 0.0
        %492 = vmatprep.subr.mxu0 0.0
        %493 = vmatpush1.msra.mxu0 0.0
        %494 = vmatprep.mubr.f32.mxu0 0.0
        %495 = vmatmul.mubr.f32.gmra.mrb[0].mxu0 %v428
        %v496 = vpop.f32.mrb[0].mxu0
        %v497 = vadd.f32 0.0, %v496
        %v498 = vpop.f32.mrb[0].mxu0
        %499 = vdwg.mxu0
        %500 = vst.msk [vmem:[%s256] sm:$0xff] %vm262, %v497
        %s501 = sand.u32 %s120, 1
        %s502 = scalar_lea.sflag [#allocation4], %s501
        %s503 = sand.u32 %s120, 1
        %s504 = smul.addr %s503, 8
        %s505 = scalar_lea.vmem [#allocation10], %s504
        // Predicated region
        $region53: #{swiglu_pallas.1} parent=35 // pred_check
          %p506 = pneg %p130
        $region54: #{swiglu_pallas.1} parent=35 // pred_check_branch
          %508 = sbr.rel (%p506) target = $region56
        $region55: #{swiglu_pallas.1} parent=35 // pred_region
          %s510 = ssub.s32 128, 128
          %511 = vsyncadd %s502, %s510
          %s512 = smul.addr %s23, 128
          %s513 = scalar_lea.hbm %s4, %s512
          %s515 = sshll.u32 %s505, 4
          %s516 = int_to_ptr.vmem [resolvable:$true] %s515
          %518 = dma.vmem_to_hbm [thread:$0]  %s516, 128, %s513, %s502
        $region56: #{swiglu_pallas.1} parent=35 // pred_fallthru
          _
      $region36: #{swiglu_pallas.1} parent=5 // pred_fallthru
        _
      %p519 = scmp.le.s32.totalorder 2, %s18
      // Predicated region
      $region57: #{swiglu_pallas.1} parent=5 // pred_check
        %p520 = pneg %p519
      $region58: #{swiglu_pallas.1} parent=5 // pred_check_branch
        %522 = sbr.rel (%p520) target = $region60
      $region59: #{swiglu_pallas.1} parent=5 // pred_region
        %s523 = ssub.s32 %s18, 2
        // Predicated region
        $region61: #{swiglu_pallas.1} parent=59 // pred_check
          %p524 = pneg %p136
        $region62: #{swiglu_pallas.1} parent=59 // pred_check_branch
          %526 = sbr.rel (%p524) target = $region64
        $region63: #{swiglu_pallas.1} parent=59 // pred_region
          %s527 = sand.u32 %s121, 1
          %s528 = scalar_lea.sflag [#allocation4], %s527
          %s529 = sand.u32 %s121, 1
          %s530 = smul.addr %s529, 8
          %s531 = scalar_lea.vmem [#allocation10], %s530
          %532 = dma.done %s528, 128
        $region64: #{swiglu_pallas.1} parent=59 // pred_fallthru
          _
      $region60: #{swiglu_pallas.1} parent=5 // pred_fallthru
        _
    $region6: #{swiglu_pallas.1} parent=1 // loop_footer
      %s22 = sadd.s32 1, %s18
    $region7: #{swiglu_pallas.1} parent=1 // loop_footer_branch
      %17 = sbr.rel target = $region3
    $region8: #{swiglu_pallas.1} parent=1 // loop_exit
      _
    %533 = vsyncpa [#allocation3], 1
    %s534 = scalar_lea.sflag [#allocation3], 1
    %535 = vsyncpa %s534, 1
    %536 = vsyncpa [#allocation6], 1
    %537 = vsyncpa [#allocation9], 1
    %538 = vsyncpa [#allocation4], 1
    %s539 = scalar_lea.sflag [#allocation4], 1
    %540 = vsyncpa %s539, 1

</llo_original>
